<compile_context>
chip_gen: v7x
topology: tpu7x:2x2x1
jax: 0.10.0
libtpu: 0.0.40
codegen_flags: <defaults>
</compile_context>

<pallas_src>
import math
import functools

import jax
import jax.numpy as jnp
from jax import lax
from jax.experimental import pallas as pl
from jax.experimental.pallas import tpu as pltpu


# -----------------------------------------------------------------------------
# generation-aware resource budget
# -----------------------------------------------------------------------------
def _device_budget():
    """Tile caps / scoped-VMEM limit derived from this TPU generation."""
    vmem_cap = 64 << 20  # conservative default (v7x-sized physical VMEM)
    try:
        info = pltpu.get_tpu_info()
        cap = getattr(info, "vmem_capacity_bytes", None)
        if cap:
            vmem_cap = int(cap)
    except Exception:
        pass
    if vmem_cap >= (100 << 20):   # 128 MiB class (v5e / v6e): big K tiles
        return dict(vmem_limit=64 << 20, q_cap=256, k_cap=1024, h_cap=8)
    # 64 MiB class (v7x): smaller K tiles / head blocks, tighter scoped limit
    return dict(vmem_limit=32 << 20, q_cap=256, k_cap=256, h_cap=4)


def _pick_tile(n, cap, align):
    """Return (tile, padded_n). Prefers an exact divisor; otherwise pads."""
    if n <= cap:
        return n, n                       # single full-dim block (layout-exempt)
    cap = max(align, (cap // align) * align)
    t = cap
    while t >= align:                     # exact divisor -> no padding needed
        if n % t == 0:
            return t, n
        t -= align
    t = cap
    return t, ((n + t - 1) // t) * t      # pad up to a multiple of the tile


def _largest_divisor_leq(n, cap):
    d = max(1, min(n, cap))
    while n % d:
        d -= 1
    return d


# -----------------------------------------------------------------------------
# kernel helpers (shared by all variants)
# -----------------------------------------------------------------------------
def _qk_logits(q, k_ref, clip, bias):
    # q: (Hb, tq, D) value (already scaled); k_ref: (Hb, tk, D) ref
    s = lax.dot_general(q, k_ref[...], (((2,), (2,)), ((0,), (0,))),
                        preferred_element_type=jnp.float32)     # (Hb, tq, tk)
    if clip is not None:
        s = clip * jnp.tanh(s)
    if bias is not None:
        s = s + bias                                            # (1, tk) bcast
    return s


def _online_softmax_step(s, v_ref, m_sc, l_sc, acc_sc):
    m_prev = m_sc[...]
    m_new = jnp.maximum(m_prev, jnp.max(s, axis=-1, keepdims=True))
    alpha = jnp.exp(m_prev - m_new)
    p = jnp.exp(s - m_new)
    l_sc[...] = alpha * l_sc[...] + jnp.sum(p, axis=-1, keepdims=True)
    # p and V in bf16 (V pre-cast in the wrapper) -> fast MXU, f32 accumulation.
    pv = lax.dot_general(p.astype(v_ref.dtype), v_ref[...],
                         (((2,), (1,)), ((0,), (0,))),
                         preferred_element_type=jnp.float32)    # (Hb, tq, Dv)
    acc_sc[...] = alpha * acc_sc[...] + pv
    m_sc[...] = m_new


def _init_state(q_ref, q_sc, m_sc, l_sc, acc_sc, inv_scale):
    # hoisted Q scaling: done once per (b, head-block, q-tile), reused over ki
    q_sc[...] = (q_ref[...] * inv_scale).astype(q_sc.dtype)
    m_sc[...] = jnp.full(m_sc.shape, -jnp.inf, dtype=m_sc.dtype)
    l_sc[...] = jnp.zeros(l_sc.shape, dtype=l_sc.dtype)
    acc_sc[...] = jnp.zeros(acc_sc.shape, dtype=acc_sc.dtype)


def _finalize(o_ref, l_sc, acc_sc):
    o_ref[...] = (acc_sc[...] *
                  pl.reciprocal(l_sc[...], approx=True)).astype(o_ref.dtype)


# -----------------------------------------------------------------------------
# kernels
# -----------------------------------------------------------------------------
def _flash_kernel_masked(live_ref, q_ref, k_ref, v_ref, bias_ref, o_ref,
                         q_sc, m_sc, l_sc, acc_sc, *, clip, inv_scale):
    b = pl.program_id(0)
    ki = pl.program_id(3)

    @pl.when(ki == 0)
    def _():
        _init_state(q_ref, q_sc, m_sc, l_sc, acc_sc, inv_scale)

    @pl.when(live_ref[b, ki] != 0)        # skip fully-masked / pad-only k-tiles
    def _():
        s = _qk_logits(q_sc[...], k_ref, clip, bias_ref[...])
        _online_softmax_step(s, v_ref, m_sc, l_sc, acc_sc)

    @pl.when(ki == pl.num_programs(3) - 1)
    def _():
        _finalize(o_ref, l_sc, acc_sc)


def _flash_kernel_nomask(q_ref, k_ref, v_ref, o_ref,
                         q_sc, m_sc, l_sc, acc_sc, *, clip, inv_scale):
    ki = pl.program_id(3)

    @pl.when(ki == 0)
    def _():
        _init_state(q_ref, q_sc, m_sc, l_sc, acc_sc, inv_scale)

    s = _qk_logits(q_sc[...], k_ref, clip, None)
    _online_softmax_step(s, v_ref, m_sc, l_sc, acc_sc)

    @pl.when(ki == pl.num_programs(3) - 1)
    def _():
        _finalize(o_ref, l_sc, acc_sc)


def _logits_kernel_masked(q_ref, k_ref, bias_ref, o_ref, *, clip, inv_scale):
    q = q_ref[...] * inv_scale
    o_ref[...] = _qk_logits(q, k_ref, clip, bias_ref[...]).astype(o_ref.dtype)


def _logits_kernel_nomask(q_ref, k_ref, o_ref, *, clip, inv_scale):
    q = q_ref[...] * inv_scale
    o_ref[...] = _qk_logits(q, k_ref, clip, None).astype(o_ref.dtype)


# -----------------------------------------------------------------------------
# wrapper
# -----------------------------------------------------------------------------
def dot_product_attention(Q, K, V, mask=None, *, clip=None, return_logits=False,
                          head_depth=16, inf=1e10,
                          q_tile_cap=None, k_tile_cap=None, head_block=None,
                          pv_bf16=True):
    """Pallas equivalent of DotProductAttention.forward((Q, K, V), mask).

    Q: (B, H, Sq, D), K: (B, H, Sk, D), V: (B, H, Sk, Dv)
    mask: (B, Sk, 1) bool (True == masked out) or None
    """
    B, H, Sq, D = Q.shape
    Sk = K.shape[2]
    Dv = V.shape[3]
    inv_scale = 1.0 / math.sqrt(head_depth)
    out_dtype = Q.dtype

    budget = _device_budget()
    q_cap = q_tile_cap if q_tile_cap is not None else budget["q_cap"]
    k_cap = k_tile_cap if k_tile_cap is not None else budget["k_cap"]
    h_cap = head_block if head_block is not None else budget["h_cap"]

    tq, Sq_p = _pick_tile(Sq, q_cap, 128)
    tk, Sk_p = _pick_tile(Sk, k_cap, 128)
    Hb = _largest_divisor_leq(H, h_cap)
    nq, nk, nh = Sq_p // tq, Sk_p // tk, H // Hb
    kpad = Sk_p - Sk

    if Sq_p != Sq:
        Q = jnp.pad(Q, ((0, 0), (0, 0), (0, Sq_p - Sq), (0, 0)))
    if kpad:
        K = jnp.pad(K, ((0, 0), (0, 0), (0, kpad), (0, 0)))
        V = jnp.pad(V, ((0, 0), (0, 0), (0, kpad), (0, 0)))

    # key mask -> additive bias (0 / -inf_value); padded keys are always masked.
    if mask is not None:
        key_masked = jnp.transpose(mask, (0, 2, 1)).astype(jnp.bool_)   # (B,1,Sk)
    elif kpad and not return_logits:
        key_masked = jnp.zeros((B, 1, Sk), jnp.bool_)   # only pad keys masked
    else:
        key_masked = None
    if key_masked is not None and kpad:
        key_masked = jnp.pad(key_masked, ((0, 0), (0, 0), (0, kpad)),
                             constant_values=True)
    has_bias = key_masked is not None
    if has_bias:
        bias = jnp.where(key_masked, jnp.float32(-inf), jnp.float32(0.0))

    cparams_flash = pltpu.CompilerParams(
        dimension_semantics=("parallel", "parallel", "parallel", "arbitrary"),
        vmem_limit_bytes=budget["vmem_limit"])
    cparams_logits = pltpu.CompilerParams(
        dimension_semantics=("parallel",) * 4,
        vmem_limit_bytes=budget["vmem_limit"])

    # ---------------- return_logits path ----------------
    if return_logits:
        use_bias = mask is not None          # pad columns are sliced off anyway
        if use_bias:
            kernel = functools.partial(_logits_kernel_masked,
                                       clip=clip, inv_scale=inv_scale)
            in_specs = [
                pl.BlockSpec((None, Hb, tq, D), lambda b, h, q, k: (b, h, q, 0)),
                pl.BlockSpec((None, Hb, tk, D), lambda b, h, q, k: (b, h, k, 0)),
                pl.BlockSpec((None, 1, tk), lambda b, h, q, k: (b, 0, k)),
            ]
            args = (Q, K, bias)
        else:
            kernel = functools.partial(_logits_kernel_nomask,
                                       clip=clip, inv_scale=inv_scale)
            in_specs = [
                pl.BlockSpec((None, Hb, tq, D), lambda b, h, q, k: (b, h, q, 0)),
                pl.BlockSpec((None, Hb, tk, D), lambda b, h, q, k: (b, h, k, 0)),
            ]
            args = (Q, K)
        out = pl.pallas_call(
            kernel,
            out_shape=jax.ShapeDtypeStruct((B, H, Sq_p, Sk_p), jnp.float32),
            grid_spec=pltpu.PrefetchScalarGridSpec(
                num_scalar_prefetch=0, grid=(B, nh, nq, nk),
                in_specs=in_specs,
                out_specs=pl.BlockSpec((None, Hb, tq, tk),
                                       lambda b, h, q, k: (b, h, q, k))),
            compiler_params=cparams_logits,
        )(*args)
        if Sq_p != Sq or Sk_p != Sk:
            out = out[:, :, :Sq, :Sk]
        return out

    # ---------------- flash softmax path ----------------
    if pv_bf16 and V.dtype == jnp.float32:
        V = V.astype(jnp.bfloat16)     # fast MXU for p@V; accumulation stays f32

    scratch = [pltpu.VMEM((Hb, tq, D), Q.dtype),       # pre-scaled Q (hoisted)
               pltpu.VMEM((Hb, tq, 1), jnp.float32),   # running max (lane-padded)
               pltpu.VMEM((Hb, tq, 1), jnp.float32),   # running sum
               pltpu.VMEM((Hb, tq, Dv), jnp.float32)]  # output accumulator

    if has_bias:
        # per-(batch, k-tile) "any unmasked" flags, scalar-prefetched into SMEM
        live = jnp.any(~key_masked[:, 0, :].reshape(B, nk, tk),
                       axis=-1).astype(jnp.int32)
        kernel = functools.partial(_flash_kernel_masked,
                                   clip=clip, inv_scale=inv_scale)
        in_specs = [
            pl.BlockSpec((None, Hb, tq, D), lambda b, h, q, k, kt: (b, h, q, 0)),
            pl.BlockSpec((None, Hb, tk, D), lambda b, h, q, k, kt: (b, h, k, 0)),
            pl.BlockSpec((None, Hb, tk, Dv), lambda b, h, q, k, kt: (b, h, k, 0)),
            pl.BlockSpec((None, 1, tk), lambda b, h, q, k, kt: (b, 0, k)),
        ]
        out_spec = pl.BlockSpec((None, Hb, tq, Dv),
                                lambda b, h, q, k, kt: (b, h, q, 0))
        out = pl.pallas_call(
            kernel,
            out_shape=jax.ShapeDtypeStruct((B, H, Sq_p, Dv), out_dtype),
            grid_spec=pltpu.PrefetchScalarGridSpec(
                num_scalar_prefetch=1, grid=(B, nh, nq, nk),
                in_specs=in_specs, out_specs=out_spec,
                scratch_shapes=scratch),
            compiler_params=cparams_flash,
        )(live, Q, K, V, bias)
    else:
        kernel = functools.partial(_flash_kernel_nomask,
                                   clip=clip, inv_scale=inv_scale)
        in_specs = [
            pl.BlockSpec((None, Hb, tq, D), lambda b, h, q, k: (b, h, q, 0)),
            pl.BlockSpec((None, Hb, tk, D), lambda b, h, q, k: (b, h, k, 0)),
            pl.BlockSpec((None, Hb, tk, Dv), lambda b, h, q, k: (b, h, k, 0)),
        ]
        out_spec = pl.BlockSpec((None, Hb, tq, Dv),
                                lambda b, h, q, k: (b, h, q, 0))
        out = pl.pallas_call(
            kernel,
            out_shape=jax.ShapeDtypeStruct((B, H, Sq_p, Dv), out_dtype),
            grid_spec=pltpu.PrefetchScalarGridSpec(
                num_scalar_prefetch=0, grid=(B, nh, nq, nk),
                in_specs=in_specs, out_specs=out_spec,
                scratch_shapes=scratch),
            compiler_params=cparams_flash,
        )(Q, K, V)

    if Sq_p != Sq:
        out = out[:, :, :Sq, :]
    return out


# -----------------------------------------------------------------------------
# pure-JAX reference (PyTorch semantics)
# -----------------------------------------------------------------------------
def _reference(Q, K, V, mask=None, *, clip=None, return_logits=False,
               head_depth=16, inf=1e10):
    scale = math.sqrt(head_depth)
    logits = jnp.einsum("bhqd,bhkd->bhqk", Q, K) / scale
    if clip is not None:
        logits = clip * jnp.tanh(logits)
    if return_logits:
        if mask is not None:
            m = jnp.transpose(mask, (0, 2, 1))[:, None]  # (B,1,1,Sk)
            logits = jnp.where(m, -inf, logits)
        return logits
    if mask is not None:
        m = mask[:, None, None, :, 0]                    # (B,1,1,Sk)
        logits = jnp.where(m, -inf, logits)
    probs = jax.nn.softmax(logits, axis=-1)
    return jnp.einsum("bhqk,bhkd->bhqd", probs, V)


if __name__ == "__main__":
    # small shapes consistent with the module defaults (head_depth=16)
    B, H, Sq, Sk, D = 2, 4, 8, 8, 16

    key = jax.random.PRNGKey(0)
    kq, kk, kv, km = jax.random.split(key, 4)
    Q = jax.random.normal(kq, (B, H, Sq, D), dtype=jnp.float32)
    K = jax.random.normal(kk, (B, H, Sk, D), dtype=jnp.float32)
    V = jax.random.normal(kv, (B, H, Sk, D), dtype=jnp.float32)
    # mask: (B, n_nodes, 1) bool, True == masked out; keep >=1 key unmasked/row
    mask = jax.random.bernoulli(km, 0.25, (B, Sk, 1))
    mask = mask.at[:, 0, :].set(False)

    TOL = dict(atol=2e-2, rtol=2e-2)

    # 1) no-mask softmax path
    out = jax.block_until_ready(dot_product_attention(Q, K, V))
    ref = _reference(Q, K, V)
    assert jnp.allclose(out, ref, **TOL), "no-mask mismatch"

    # 2) masked softmax path (tile-skip flags + bias)
    out_m = jax.block_until_ready(dot_product_attention(Q, K, V, mask=mask))
    ref_m = _reference(Q, K, V, mask=mask)
    assert jnp.allclose(out_m, ref_m, **TOL), "mask mismatch"

    # 3) clip + mask
    out_c = jax.block_until_ready(
        dot_product_attention(Q, K, V, mask=mask, clip=10.0))
    ref_c = _reference(Q, K, V, mask=mask, clip=10.0)
    assert jnp.allclose(out_c, ref_c, **TOL), "clip mismatch"

    # 4) return_logits path (masked and unmasked)
    lg = jax.block_until_ready(
        dot_product_attention(Q, K, V, mask=mask, return_logits=True))
    lg_ref = _reference(Q, K, V, mask=mask, return_logits=True)
    assert jnp.allclose(lg, lg_ref, atol=1e-4, rtol=1e-4), "logits mismatch"
    lg0 = jax.block_until_ready(dot_product_attention(Q, K, V, return_logits=True))
    lg0_ref = _reference(Q, K, V, return_logits=True)
    assert jnp.allclose(lg0, lg0_ref, atol=1e-4, rtol=1e-4), "logits(nomask) mismatch"

    # 5) medium shape exercising head/q/k tiling (forced small caps so nk=4, nq=2)
    B2, H2, Sq2, Sk2, D2 = 1, 2, 256, 1024, 64
    k1, k2, k3, k4 = jax.random.split(jax.random.PRNGKey(1), 4)
    Q2 = jax.random.normal(k1, (B2, H2, Sq2, D2), dtype=jnp.float32)
    K2 = jax.random.normal(k2, (B2, H2, Sk2, D2), dtype=jnp.float32)
    V2 = jax.random.normal(k3, (B2, H2, Sk2, D2), dtype=jnp.float32)
    mask2 = jax.random.bernoulli(k4, 0.25, (B2, Sk2, 1))
    mask2 = mask2.at[:, 0, :].set(False)
    out2 = jax.block_until_ready(
        dot_product_attention(Q2, K2, V2, mask=mask2, head_depth=D2,
                              q_tile_cap=128, k_tile_cap=256))
    ref2 = _reference(Q2, K2, V2, mask=mask2, head_depth=D2)
    assert jnp.allclose(out2, ref2, **TOL), "tiled mismatch"

    # 6) non-divisible Sq/Sk exercising the padded-tail path
    B3, H3, Sq3, Sk3, D3 = 1, 2, 160, 200, 32
    j1, j2, j3, j4 = jax.random.split(jax.random.PRNGKey(2), 4)
    Q3 = jax.random.normal(j1, (B3, H3, Sq3, D3), dtype=jnp.float32)
    K3 = jax.random.normal(j2, (B3, H3, Sk3, D3), dtype=jnp.float32)
    V3 = jax.random.normal(j3, (B3, H3, Sk3, D3), dtype=jnp.float32)
    mask3 = jax.random.bernoulli(j4, 0.25, (B3, Sk3, 1))
    mask3 = mask3.at[:, 0, :].set(False)
    out3 = jax.block_until_ready(
        dot_product_attention(Q3, K3, V3, mask=mask3, head_depth=D3,
                              q_tile_cap=128, k_tile_cap=128))
    ref3 = _reference(Q3, K3, V3, mask=mask3, head_depth=D3)
    assert jnp.allclose(out3, ref3, **TOL), "padded-tail mismatch"

    print("KERNEL_OK")
</pallas_src>

<mosaic_0001>
module attributes {stable_mosaic.version = 11 : i64} {
  func.func @_flash_kernel_nomask(%arg0: i32, %arg1: i32, %arg2: i32, %arg3: i32, %arg4: memref<1x4x8x16xf32, #tpu.memory_space<vmem>>, %arg5: memref<1x4x8x16xf32, #tpu.memory_space<vmem>>, %arg6: memref<1x4x8x16xbf16, #tpu.memory_space<vmem>>, %arg7: memref<1x4x8x16xf32, #tpu.memory_space<vmem>>, %arg8: memref<4x8x16xf32, #tpu.memory_space<vmem>>, %arg9: memref<4x8x1xf32, #tpu.memory_space<vmem>>, %arg10: memref<4x8x1xf32, #tpu.memory_space<vmem>>, %arg11: memref<4x8x16xf32, #tpu.memory_space<vmem>>) attributes {dimension_semantics = [#tpu.dimension_semantics<parallel>, #tpu.dimension_semantics<parallel>, #tpu.dimension_semantics<parallel>, #tpu.dimension_semantics<arbitrary>], iteration_bounds = array<i64: 2, 1, 1, 1>, scalar_prefetch = 0 : i64, scratch_operands = 4 : i64, tpu.core_type = #tpu.core_type<tc>, window_params = [{transform_indices = @transform_0, window_bounds = array<i64: 1, 4, 8, 16>}, {transform_indices = @transform_1, window_bounds = array<i64: 1, 4, 8, 16>}, {transform_indices = @transform_2, window_bounds = array<i64: 1, 4, 8, 16>}, {transform_indices = @transform_3, window_bounds = array<i64: 1, 4, 8, 16>}]} {
    %c0_i32 = arith.constant 0 : i32
    %0 = arith.cmpi eq, %arg3, %c0_i32 : i32
    %1 = arith.extui %0 : i1 to i32
    %c0_i32_0 = arith.constant 0 : i32
    %2 = arith.cmpi ne, %1, %c0_i32_0 : i32
    scf.if %2 {
      %c0_34 = arith.constant 0 : index
      %c0_35 = arith.constant 0 : index
      %c0_36 = arith.constant 0 : index
      %c0_37 = arith.constant 0 : index
      %35 = vector.load %arg4[%c0_34, %c0_35, %c0_36, %c0_37] : memref<1x4x8x16xf32, #tpu.memory_space<vmem>>, vector<1x4x8x16xf32>
      %36 = vector.shape_cast %35 : vector<1x4x8x16xf32> to vector<4x8x16xf32>
      %cst_38 = arith.constant 2.500000e-01 : f32
      %37 = vector.broadcast %cst_38 : f32 to vector<4x8x16xf32>
      %38 = arith.mulf %36, %37 : vector<4x8x16xf32>
      %c0_39 = arith.constant 0 : index
      %c0_40 = arith.constant 0 : index
      %c0_41 = arith.constant 0 : index
      %39 = vector.load %arg8[%c0_39, %c0_40, %c0_41] : memref<4x8x16xf32, #tpu.memory_space<vmem>>, vector<4x8x16xf32>
      tpu.vector_store %arg8[%c0_39, %c0_40, %c0_41], %38 {strides = array<i32>} : memref<4x8x16xf32, #tpu.memory_space<vmem>>, vector<4x8x16xf32>,
      %cst_42 = arith.constant 0xFF800000 : f32
      %40 = vector.broadcast %cst_42 : f32 to vector<4x8x1xf32>
      %c0_43 = arith.constant 0 : index
      %c0_44 = arith.constant 0 : index
      %c0_45 = arith.constant 0 : index
      %41 = vector.load %arg9[%c0_43, %c0_44, %c0_45] : memref<4x8x1xf32, #tpu.memory_space<vmem>>, vector<4x8x1xf32>
      tpu.vector_store %arg9[%c0_43, %c0_44, %c0_45], %40 {strides = array<i32>} : memref<4x8x1xf32, #tpu.memory_space<vmem>>, vector<4x8x1xf32>,
      %cst_46 = arith.constant 0.000000e+00 : f32
      %42 = vector.broadcast %cst_46 : f32 to vector<4x8x1xf32>
      %c0_47 = arith.constant 0 : index
      %c0_48 = arith.constant 0 : index
      %c0_49 = arith.constant 0 : index
      %43 = vector.load %arg10[%c0_47, %c0_48, %c0_49] : memref<4x8x1xf32, #tpu.memory_space<vmem>>, vector<4x8x1xf32>
      tpu.vector_store %arg10[%c0_47, %c0_48, %c0_49], %42 {strides = array<i32>} : memref<4x8x1xf32, #tpu.memory_space<vmem>>, vector<4x8x1xf32>,
      %cst_50 = arith.constant 0.000000e+00 : f32
      %44 = vector.broadcast %cst_50 : f32 to vector<4x8x16xf32>
      %c0_51 = arith.constant 0 : index
      %c0_52 = arith.constant 0 : index
      %c0_53 = arith.constant 0 : index
      %45 = vector.load %arg11[%c0_51, %c0_52, %c0_53] : memref<4x8x16xf32, #tpu.memory_space<vmem>>, vector<4x8x16xf32>
      tpu.vector_store %arg11[%c0_51, %c0_52, %c0_53], %44 {strides = array<i32>} : memref<4x8x16xf32, #tpu.memory_space<vmem>>, vector<4x8x16xf32>,
    } else {
    }
    %c0 = arith.constant 0 : index
    %c0_1 = arith.constant 0 : index
    %c0_2 = arith.constant 0 : index
    %3 = vector.load %arg8[%c0, %c0_1, %c0_2] : memref<4x8x16xf32, #tpu.memory_space<vmem>>, vector<4x8x16xf32>
    %c0_3 = arith.constant 0 : index
    %c0_4 = arith.constant 0 : index
    %c0_5 = arith.constant 0 : index
    %c0_6 = arith.constant 0 : index
    %4 = vector.load %arg5[%c0_3, %c0_4, %c0_5, %c0_6] : memref<1x4x8x16xf32, #tpu.memory_space<vmem>>, vector<1x4x8x16xf32>
    %5 = vector.shape_cast %4 : vector<1x4x8x16xf32> to vector<4x8x16xf32>
    %cst = arith.constant dense<0.000000e+00> : vector<4x8x8xf32>
    %6 = tpu.matmul %3, %5, %cst {dimension_numbers = #tpu.dot_dimension_numbers<[2], [2], [1], [1], [0, 0, 0, 1, 1, 1], [0], [0]>} : vector<4x8x16xf32>, vector<4x8x16xf32>, vector<4x8x8xf32> -> vector<4x8x8xf32>
    %c0_7 = arith.constant 0 : index
    %c0_8 = arith.constant 0 : index
    %c0_9 = arith.constant 0 : index
    %7 = vector.load %arg9[%c0_7, %c0_8, %c0_9] : memref<4x8x1xf32, #tpu.memory_space<vmem>>, vector<4x8x1xf32>
    %cst_10 = arith.constant dense<0xFF800000> : vector<4x8xf32>
    %8 = vector.multi_reduction <maximumf>, %6, %cst_10 [2] : vector<4x8x8xf32> to vector<4x8xf32>
    %9 = vector.shape_cast %8 : vector<4x8xf32> to vector<4x8x1xf32>
    %10 = arith.maximumf %7, %9 : vector<4x8x1xf32>
    %11 = arith.subf %7, %10 : vector<4x8x1xf32>
    %12 = math.exp %11 : vector<4x8x1xf32>
    %13 = vector.broadcast %10 : vector<4x8x1xf32> to vector<4x8x8xf32>
    %14 = arith.subf %6, %13 : vector<4x8x8xf32>
    %15 = math.exp %14 : vector<4x8x8xf32>
    %c0_11 = arith.constant 0 : index
    %c0_12 = arith.constant 0 : index
    %c0_13 = arith.constant 0 : index
    %16 = vector.load %arg10[%c0_11, %c0_12, %c0_13] : memref<4x8x1xf32, #tpu.memory_space<vmem>>, vector<4x8x1xf32>
    %17 = arith.mulf %12, %16 : vector<4x8x1xf32>
    %cst_14 = arith.constant dense<0.000000e+00> : vector<4x8xf32>
    %18 = vector.multi_reduction <add>, %15, %cst_14 [2] : vector<4x8x8xf32> to vector<4x8xf32>
    %19 = vector.shape_cast %18 : vector<4x8xf32> to vector<4x8x1xf32>
    %20 = arith.addf %17, %19 : vector<4x8x1xf32>
    %c0_15 = arith.constant 0 : index
    %c0_16 = arith.constant 0 : index
    %c0_17 = arith.constant 0 : index
    %21 = vector.load %arg10[%c0_15, %c0_16, %c0_17] : memref<4x8x1xf32, #tpu.memory_space<vmem>>, vector<4x8x1xf32>
    tpu.vector_store %arg10[%c0_15, %c0_16, %c0_17], %20 {strides = array<i32>} : memref<4x8x1xf32, #tpu.memory_space<vmem>>, vector<4x8x1xf32>,
    %22 = arith.truncf %15 : vector<4x8x8xf32> to vector<4x8x8xbf16>
    %c0_18 = arith.constant 0 : index
    %c0_19 = arith.constant 0 : index
    %c0_20 = arith.constant 0 : index
    %c0_21 = arith.constant 0 : index
    %23 = vector.load %arg6[%c0_18, %c0_19, %c0_20, %c0_21] : memref<1x4x8x16xbf16, #tpu.memory_space<vmem>>, vector<1x4x8x16xbf16>
    %24 = vector.shape_cast %23 : vector<1x4x8x16xbf16> to vector<4x8x16xbf16>
    %cst_22 = arith.constant dense<0.000000e+00> : vector<4x8x16xf32>
    %25 = tpu.matmul %22, %24, %cst_22 {dimension_numbers = #tpu.dot_dimension_numbers<[2], [1], [1], [2], [0, 0, 0, 1, 1, 2], [0], [0]>} : vector<4x8x8xbf16>, vector<4x8x16xbf16>, vector<4x8x16xf32> -> vector<4x8x16xf32>
    %c0_23 = arith.constant 0 : index
    %c0_24 = arith.constant 0 : index
    %c0_25 = arith.constant 0 : index
    %26 = vector.load %arg11[%c0_23, %c0_24, %c0_25] : memref<4x8x16xf32, #tpu.memory_space<vmem>>, vector<4x8x16xf32>
    %27 = vector.broadcast %12 : vector<4x8x1xf32> to vector<4x8x16xf32>
    %28 = arith.mulf %27, %26 : vector<4x8x16xf32>
    %29 = arith.addf %28, %25 : vector<4x8x16xf32>
    %c0_26 = arith.constant 0 : index
    %c0_27 = arith.constant 0 : index
    %c0_28 = arith.constant 0 : index
    %30 = vector.load %arg11[%c0_26, %c0_27, %c0_28] : memref<4x8x16xf32, #tpu.memory_space<vmem>>, vector<4x8x16xf32>
    tpu.vector_store %arg11[%c0_26, %c0_27, %c0_28], %29 {strides = array<i32>} : memref<4x8x16xf32, #tpu.memory_space<vmem>>, vector<4x8x16xf32>,
    %c0_29 = arith.constant 0 : index
    %c0_30 = arith.constant 0 : index
    %c0_31 = arith.constant 0 : index
    %31 = vector.load %arg9[%c0_29, %c0_30, %c0_31] : memref<4x8x1xf32, #tpu.memory_space<vmem>>, vector<4x8x1xf32>
    tpu.vector_store %arg9[%c0_29, %c0_30, %c0_31], %10 {strides = array<i32>} : memref<4x8x1xf32, #tpu.memory_space<vmem>>, vector<4x8x1xf32>,
    %c0_i32_32 = arith.constant 0 : i32
    %32 = arith.cmpi eq, %arg3, %c0_i32_32 : i32
    %33 = arith.extui %32 : i1 to i32
    %c0_i32_33 = arith.constant 0 : i32
    %34 = arith.cmpi ne, %33, %c0_i32_33 : i32
    scf.if %34 {
      %c0_34 = arith.constant 0 : index
      %c0_35 = arith.constant 0 : index
      %c0_36 = arith.constant 0 : index
      %35 = vector.load %arg11[%c0_34, %c0_35, %c0_36] : memref<4x8x16xf32, #tpu.memory_space<vmem>>, vector<4x8x16xf32>
      %c0_37 = arith.constant 0 : index
      %c0_38 = arith.constant 0 : index
      %c0_39 = arith.constant 0 : index
      %36 = vector.load %arg10[%c0_37, %c0_38, %c0_39] : memref<4x8x1xf32, #tpu.memory_space<vmem>>, vector<4x8x1xf32>
      %37 = tpu.reciprocal %36 {approx = true} : vector<4x8x1xf32> -> vector<4x8x1xf32>
      %38 = vector.broadcast %37 : vector<4x8x1xf32> to vector<4x8x16xf32>
      %39 = arith.mulf %35, %38 : vector<4x8x16xf32>
      %c0_40 = arith.constant 0 : index
      %c0_41 = arith.constant 0 : index
      %c0_42 = arith.constant 0 : index
      %c0_43 = arith.constant 0 : index
      %40 = vector.load %arg7[%c0_40, %c0_41, %c0_42, %c0_43] : memref<1x4x8x16xf32, #tpu.memory_space<vmem>>, vector<1x4x8x16xf32>
      %41 = vector.shape_cast %40 : vector<1x4x8x16xf32> to vector<4x8x16xf32>
      %42 = vector.shape_cast %39 : vector<4x8x16xf32> to vector<1x4x8x16xf32>
      tpu.vector_store %arg7[%c0_40, %c0_41, %c0_42, %c0_43], %42 {strides = array<i32>} : memref<1x4x8x16xf32, #tpu.memory_space<vmem>>, vector<1x4x8x16xf32>,
    } else {
    }
    return
  }
  func.func @transform_0(%arg0: i32, %arg1: i32, %arg2: i32, %arg3: i32) -> (i32, i32, i32, i32) {
    %c0_i32 = arith.constant 0 : i32
    %c0_i32_0 = arith.constant 0 : i32
    return %arg0, %arg1, %arg2, %c0_i32 : i32, i32, i32, i32
  }
  func.func @transform_1(%arg0: i32, %arg1: i32, %arg2: i32, %arg3: i32) -> (i32, i32, i32, i32) {
    %c0_i32 = arith.constant 0 : i32
    %c0_i32_0 = arith.constant 0 : i32
    return %arg0, %arg1, %arg3, %c0_i32 : i32, i32, i32, i32
  }
  func.func @transform_2(%arg0: i32, %arg1: i32, %arg2: i32, %arg3: i32) -> (i32, i32, i32, i32) {
    %c0_i32 = arith.constant 0 : i32
    %c0_i32_0 = arith.constant 0 : i32
    return %arg0, %arg1, %arg3, %c0_i32 : i32, i32, i32, i32
  }
  func.func @transform_3(%arg0: i32, %arg1: i32, %arg2: i32, %arg3: i32) -> (i32, i32, i32, i32) {
    %c0_i32 = arith.constant 0 : i32
    %c0_i32_0 = arith.constant 0 : i32
    return %arg0, %arg1, %arg2, %c0_i32 : i32, i32, i32, i32
  }
}

</mosaic_0001>

<llo_original>
// kernel: tpu_custom_call.1
$region0: #{tpu_custom_call.1}
  #allocation0 [shape = 'u32[]', space=smem, size = 0x4, offset = 0x4, fixed_abs, tag = 'smem constant byte address 0x4 - core index']
  #allocation1 [shape = 'u32[144,128]{1,0:T(1,128)}', space=vmem, size = 0x12000, scoped, tag = 'internal scratch']
  #allocation2 [shape = 'f32[4,8,16]{2,1,0:T(8,128)}', space=vmem, size = 0x4000, scoped, tag = 'scratch operand']
  #allocation3 [shape = 'f32[4,8,1]{2,1,0:T(8,128)}', space=vmem, size = 0x4000, scoped, tag = 'scratch operand']
  #allocation4 [shape = 'f32[4,8,1]{2,1,0:T(8,128)}', space=vmem, size = 0x4000, scoped, tag = 'scratch operand']
  #allocation5 [shape = 'f32[4,8,16]{2,1,0:T(8,128)}', space=vmem, size = 0x4000, scoped, tag = 'scratch operand']
  %s0 = inlined_call_operand.hbm [shape: f32[2,4,8,16], index: 0, kind: input, shape index: {}]
  %s1 = inlined_call_operand.hbm [shape: f32[2,4,8,16], index: 1, kind: input, shape index: {}]
  %s2 = inlined_call_operand.hbm [shape: bf16[2,4,8,16], index: 2, kind: input, shape index: {}]
  %s3 = inlined_call_operand.hbm [shape: f32[2,4,8,16], index: 3, kind: output, shape index: {}]
  %s4 = sld [smem:[#allocation0]]
  $region65: #{tpu_custom_call.1} parent=0
    _
  %s6 = ssub.s32 1, %s4
  %s7 = scalar_select 0, %s6, %s4
  $region1: #{tpu_custom_call.1} parent=0
    #allocation6 [shape = 'u8[32768]{0}', space=vmem, size = 0x8000, scoped, tag = 'input window, operand 0']
    #allocation7 [shape = 's32[2]{0}', space=sflag, size = 0x8, scoped, tag = 'scoped memory for tpu_custom_call.1']
    #allocation8 [shape = 's32[2]{0}', space=sflag, size = 0x8, scoped, tag = 'scoped memory for tpu_custom_call.1']
    #allocation9 [shape = 'u8[32768]{0}', space=vmem, size = 0x8000, scoped, tag = 'input window, operand 1']
    #allocation10 [shape = 's32[2]{0}', space=sflag, size = 0x8, scoped, tag = 'scoped memory for tpu_custom_call.1']
    #allocation11 [shape = 'u8[16384]{0}', space=vmem, size = 0x4000, scoped, tag = 'input window, operand 2']
    #allocation12 [shape = 'u8[32768]{0}', space=vmem, size = 0x8000, scoped, tag = 'output window, operand 0']
    %8 = vsyncpa [#allocation7], 0
    %s9 = scalar_lea.sflag [#allocation7], 1
    %10 = vsyncpa %s9, 0
    %11 = vsyncpa [#allocation10], 0
    %s12 = scalar_lea.sflag [#allocation10], 1
    %13 = vsyncpa %s12, 0
    %14 = vsyncpa [#allocation8], 0
    %s15 = scalar_lea.sflag [#allocation8], 1
    %16 = vsyncpa %s15, 0
    loop: start=0, step=1, limit=4
    $region2: #{tpu_custom_call.1} parent=1 // loop_pre_header
      _
    $region3: #{tpu_custom_call.1} parent=1 // loop_header
      %s18 = sphi 0, %s22
      %p19 = scmp.ge.s32.totalorder %s18, 4
      %s25 = sphi 0, %s51
      %s26 = sphi 0, %s47
      %s27 = sphi 0, %s43
      %s28 = sphi 0, %s39
      %s29 = sphi 0, %s25
      %s30 = sphi 0, %s26
      %s31 = sphi 0, %s27
      %s32 = sphi 0, %s28
      %s33 = sphi 0, %s29
      %s34 = sphi 0, %s30
      %s35 = sphi 0, %s31
      %s36 = sphi 0, %s32
      %s58 = sphi 0, %s60
      %s61 = sphi 0, %s58
      %s62 = sphi 0, %s61
      %s78 = sphi 0, %s62
      %s88 = sphi 0, %s90
      %s91 = sphi 0, %s88
      %s92 = sphi 0, %s91
      %s108 = sphi 0, %s92
      %s118 = sphi 0, %s120
      %s121 = sphi 0, %s118
      %s122 = sphi 0, %s121
      %s138 = sphi 0, %s122
      %s148 = sphi 0, %s150
      %s151 = sphi 0, %s148
      %s152 = sphi 0, %s151
      %s168 = sphi 0, %s152
    $region4: #{tpu_custom_call.1} parent=1 // loop_header_branch
      %21 = sbr.rel (%p19) target = $region8
    $region5: #{tpu_custom_call.1} parent=1 // loop_body
      %s23 = ssub.s32 %s18, 1
      %s24 = ssub.s32 %s18, 2
      %s37 = sadd.s32 1, %s28
      %p38 = scmp.ge.s32.totalorder %s37, 1
      %s39 = scalar_select %p38, 0, %s37
      %s40 = sadd.s32 1, %s27
      %s41 = scalar_select %p38, %s40, %s27
      %p42 = scmp.ge.s32.totalorder %s41, 1
      %s43 = scalar_select %p42, 0, %s41
      %s44 = sadd.s32 1, %s26
      %s45 = scalar_select %p42, %s44, %s26
      %p46 = scmp.ge.s32.totalorder %s45, 1
      %s47 = scalar_select %p46, 0, %s45
      %s48 = sadd.s32 1, %s25
      %s49 = scalar_select %p46, %s48, %s25
      %p50 = scmp.ge.s32.totalorder %s49, 2
      %s51 = scalar_select %p50, 0, %s49
      %s52 = ssub.s32 %s25, %s51
      %s53 = ssub.s32 %s26, %s47
      %s54 = sor.u32 %s52, %s53
      %s55 = ssub.s32 %s27, %s43
      %s56 = sor.u32 %s54, %s55
      %p57 = scmp.eq.s32.totalorder %s56, 0
      %s59 = sadd.s32 %s58, 1
      %s60 = scalar_select %p57, %s58, %s59
      %p63 = pneg %p57
      %p64 = scmp.eq.s32.totalorder %s18, 1
      %p65 = por %p63, %p64
      %p66 = scmp.ne.s32.totalorder %s58, %s61
      %p67 = scmp.eq.s32.totalorder %s18, 0
      %p68 = por %p66, %p67
      %p69 = scmp.ne.s32.totalorder %s58, %s61
      %p70 = scmp.eq.s32.totalorder %s23, 1
      %p71 = por %p69, %p70
      %p72 = scmp.ne.s32.totalorder %s61, %s62
      %p73 = scmp.eq.s32.totalorder %s23, 0
      %p74 = por %p72, %p73
      %p75 = scmp.ne.s32.totalorder %s61, %s62
      %p76 = scmp.eq.s32.totalorder %s24, 1
      %p77 = por %p75, %p76
      %p79 = scmp.ne.s32.totalorder %s62, %s78
      %p80 = scmp.eq.s32.totalorder %s24, 0
      %p81 = por %p79, %p80
      %s82 = ssub.s32 %s25, %s51
      %s83 = ssub.s32 %s26, %s47
      %s84 = sor.u32 %s82, %s83
      %s85 = ssub.s32 %s28, %s39
      %s86 = sor.u32 %s84, %s85
      %p87 = scmp.eq.s32.totalorder %s86, 0
      %s89 = sadd.s32 %s88, 1
      %s90 = scalar_select %p87, %s88, %s89
      %p93 = pneg %p87
      %p94 = scmp.eq.s32.totalorder %s18, 1
      %p95 = por %p93, %p94
      %p96 = scmp.ne.s32.totalorder %s88, %s91
      %p97 = scmp.eq.s32.totalorder %s18, 0
      %p98 = por %p96, %p97
      %p99 = scmp.ne.s32.totalorder %s88, %s91
      %p100 = scmp.eq.s32.totalorder %s23, 1
      %p101 = por %p99, %p100
      %p102 = scmp.ne.s32.totalorder %s91, %s92
      %p103 = scmp.eq.s32.totalorder %s23, 0
      %p104 = por %p102, %p103
      %p105 = scmp.ne.s32.totalorder %s91, %s92
      %p106 = scmp.eq.s32.totalorder %s24, 1
      %p107 = por %p105, %p106
      %p109 = scmp.ne.s32.totalorder %s92, %s108
      %p110 = scmp.eq.s32.totalorder %s24, 0
      %p111 = por %p109, %p110
      %s112 = ssub.s32 %s25, %s51
      %s113 = ssub.s32 %s26, %s47
      %s114 = sor.u32 %s112, %s113
      %s115 = ssub.s32 %s28, %s39
      %s116 = sor.u32 %s114, %s115
      %p117 = scmp.eq.s32.totalorder %s116, 0
      %s119 = sadd.s32 %s118, 1
      %s120 = scalar_select %p117, %s118, %s119
      %p123 = pneg %p117
      %p124 = scmp.eq.s32.totalorder %s18, 1
      %p125 = por %p123, %p124
      %p126 = scmp.ne.s32.totalorder %s118, %s121
      %p127 = scmp.eq.s32.totalorder %s18, 0
      %p128 = por %p126, %p127
      %p129 = scmp.ne.s32.totalorder %s118, %s121
      %p130 = scmp.eq.s32.totalorder %s23, 1
      %p131 = por %p129, %p130
      %p132 = scmp.ne.s32.totalorder %s121, %s122
      %p133 = scmp.eq.s32.totalorder %s23, 0
      %p134 = por %p132, %p133
      %p135 = scmp.ne.s32.totalorder %s121, %s122
      %p136 = scmp.eq.s32.totalorder %s24, 1
      %p137 = por %p135, %p136
      %p139 = scmp.ne.s32.totalorder %s122, %s138
      %p140 = scmp.eq.s32.totalorder %s24, 0
      %p141 = por %p139, %p140
      %s142 = ssub.s32 %s25, %s51
      %s143 = ssub.s32 %s26, %s47
      %s144 = sor.u32 %s142, %s143
      %s145 = ssub.s32 %s27, %s43
      %s146 = sor.u32 %s144, %s145
      %p147 = scmp.eq.s32.totalorder %s146, 0
      %s149 = sadd.s32 %s148, 1
      %s150 = scalar_select %p147, %s148, %s149
      %p153 = pneg %p147
      %p154 = scmp.eq.s32.totalorder %s18, 1
      %p155 = por %p153, %p154
      %p156 = scmp.ne.s32.totalorder %s148, %s151
      %p157 = scmp.eq.s32.totalorder %s18, 0
      %p158 = por %p156, %p157
      %p159 = scmp.ne.s32.totalorder %s148, %s151
      %p160 = scmp.eq.s32.totalorder %s23, 1
      %p161 = por %p159, %p160
      %p162 = scmp.ne.s32.totalorder %s151, %s152
      %p163 = scmp.eq.s32.totalorder %s23, 0
      %p164 = por %p162, %p163
      %p165 = scmp.ne.s32.totalorder %s151, %s152
      %p166 = scmp.eq.s32.totalorder %s24, 1
      %p167 = por %p165, %p166
      %p169 = scmp.ne.s32.totalorder %s152, %s168
      %p170 = scmp.eq.s32.totalorder %s24, 0
      %p171 = por %p169, %p170
      %p172 = scmp.le.s32.totalorder 1, %s18
      %p173 = scmp.lt.s32.totalorder %s18, 3
      %p174 = pnand %p172, %p173
      %p175 = pneg %p174
      // Predicated region
      $region9: #{tpu_custom_call.1} parent=5 // pred_check
        _
      $region10: #{tpu_custom_call.1} parent=5 // pred_check_branch
        %177 = sbr.rel (%p174) target = $region12
      $region11: #{tpu_custom_call.1} parent=5 // pred_region
        %s178 = ssub.s32 %s18, 1
      $region12: #{tpu_custom_call.1} parent=5 // pred_fallthru
        _
      %p179 = scmp.lt.s32.totalorder %s18, 2
      // Predicated region
      $region13: #{tpu_custom_call.1} parent=5 // pred_check
        %p180 = pneg %p179
      $region14: #{tpu_custom_call.1} parent=5 // pred_check_branch
        %182 = sbr.rel (%p180) target = $region16
      $region15: #{tpu_custom_call.1} parent=5 // pred_region
        // Predicated region
        $region17: #{tpu_custom_call.1} parent=15 // pred_check
          %p183 = pneg %p68
        $region18: #{tpu_custom_call.1} parent=15 // pred_check_branch
          %185 = sbr.rel (%p183) target = $region20
        $region19: #{tpu_custom_call.1} parent=15 // pred_region
          %s186 = sand.u32 %s58, 1
          %s187 = scalar_lea.sflag [#allocation7], %s186
          %s188 = sand.u32 %s58, 1
          %s189 = smul.addr %s188, 32
          %s190 = scalar_lea.vmem [#allocation6], %s189
          %s191 = smul.u32 4, %s26
          %s193 = ssub.s32 512, 512
          %194 = vsyncadd %s187, %s193
          %s195 = sadd.s32 %s27, %s191
          %s196 = smul.addr %s25, 4
          %s197 = sadd.s32 %s195, %s196
          %s198 = smul.addr %s197, 128
          %s199 = scalar_lea.hbm %s0, %s198
          %s200 = sshll.u32 %s190, 4
          %s201 = int_to_ptr.vmem [resolvable:$true] %s200
          %206 = dma.hbm_to_vmem [thread:$0]  %s199, 512, %s201, %s187, 128, 128, 8
        $region20: #{tpu_custom_call.1} parent=15 // pred_fallthru
          _
        // Predicated region
        $region21: #{tpu_custom_call.1} parent=15 // pred_check
          %p207 = pneg %p98
        $region22: #{tpu_custom_call.1} parent=15 // pred_check_branch
          %209 = sbr.rel (%p207) target = $region24
        $region23: #{tpu_custom_call.1} parent=15 // pred_region
          %s210 = sand.u32 %s18, 1
          %s211 = scalar_lea.sflag [#allocation10], %s210
          %s212 = sand.u32 %s88, 1
          %s213 = smul.addr %s212, 32
          %s214 = scalar_lea.vmem [#allocation9], %s213
          %s215 = smul.u32 4, %s26
          %s217 = ssub.s32 512, 512
          %218 = vsyncadd %s211, %s217
          %s219 = sadd.s32 %s28, %s215
          %s220 = smul.addr %s25, 4
          %s221 = sadd.s32 %s219, %s220
          %s222 = smul.addr %s221, 128
          %s223 = scalar_lea.hbm %s1, %s222
          %s224 = sshll.u32 %s214, 4
          %s225 = int_to_ptr.vmem [resolvable:$true] %s224
          %230 = dma.hbm_to_vmem [thread:$0]  %s223, 512, %s225, %s211, 128, 128, 8
        $region24: #{tpu_custom_call.1} parent=15 // pred_fallthru
          _
        // Predicated region
        $region25: #{tpu_custom_call.1} parent=15 // pred_check
          %p231 = pneg %p128
        $region26: #{tpu_custom_call.1} parent=15 // pred_check_branch
          %233 = sbr.rel (%p231) target = $region28
        $region27: #{tpu_custom_call.1} parent=15 // pred_region
          %s234 = sand.u32 %s18, 1
          %s235 = scalar_lea.sflag [#allocation10], %s234
          %s236 = sand.u32 %s118, 1
          %s237 = smul.addr %s236, 16
          %s238 = scalar_lea.vmem [#allocation11], %s237
          %s239 = smul.u32 4, %s26
          %s241 = ssub.s32 256, 256
          %242 = vsyncadd %s235, %s241
          %s243 = sadd.s32 %s28, %s239
          %s244 = smul.addr %s25, 4
          %s245 = sadd.s32 %s243, %s244
          %s246 = smul.addr %s245, 64
          %s247 = scalar_lea.hbm %s2, %s246
          %s248 = sshll.u32 %s238, 4
          %s249 = int_to_ptr.vmem [resolvable:$true] %s248
          %254 = dma.hbm_to_vmem [thread:$0]  %s247, 256, %s249, %s235, 64, 64, 4
        $region28: #{tpu_custom_call.1} parent=15 // pred_fallthru
          _
      $region16: #{tpu_custom_call.1} parent=5 // pred_fallthru
        _
      %p255 = scmp.le.s32.totalorder 1, %s18
      %p256 = scmp.lt.s32.totalorder %s18, 3
      %p257 = pnand %p255, %p256
      %p258 = pneg %p257
      // Predicated region
      $region29: #{tpu_custom_call.1} parent=5 // pred_check
        _
      $region30: #{tpu_custom_call.1} parent=5 // pred_check_branch
        %260 = sbr.rel (%p257) target = $region32
      $region31: #{tpu_custom_call.1} parent=5 // pred_region
        %s261 = ssub.s32 %s18, 1
        %s262 = sand.u32 %s61, 1
        %s263 = scalar_lea.sflag [#allocation7], %s262
        %s264 = sand.u32 %s61, 1
        %s265 = smul.addr %s264, 32
        %s266 = scalar_lea.vmem [#allocation6], %s265
        // Predicated region
        $region33: #{tpu_custom_call.1} parent=31 // pred_check
          %p267 = pneg %p74
        $region34: #{tpu_custom_call.1} parent=31 // pred_check_branch
          %269 = sbr.rel (%p267) target = $region36
        $region35: #{tpu_custom_call.1} parent=31 // pred_region
          %270 = dma.done %s263, 512
        $region36: #{tpu_custom_call.1} parent=31 // pred_fallthru
          _
        %s271 = sand.u32 %s23, 1
        %s272 = scalar_lea.sflag [#allocation10], %s271
        %s273 = sand.u32 %s91, 1
        %s274 = smul.addr %s273, 32
        %s275 = scalar_lea.vmem [#allocation9], %s274
        // Predicated region
        $region37: #{tpu_custom_call.1} parent=31 // pred_check
          %p276 = pneg %p104
        $region38: #{tpu_custom_call.1} parent=31 // pred_check_branch
          %278 = sbr.rel (%p276) target = $region40
        $region39: #{tpu_custom_call.1} parent=31 // pred_region
          %279 = dma.done %s272, 512
        $region40: #{tpu_custom_call.1} parent=31 // pred_fallthru
          _
        %s280 = sand.u32 %s23, 1
        %s281 = scalar_lea.sflag [#allocation10], %s280
        %s282 = sand.u32 %s121, 1
        %s283 = smul.addr %s282, 16
        %s284 = scalar_lea.vmem [#allocation11], %s283
        // Predicated region
        $region41: #{tpu_custom_call.1} parent=31 // pred_check
          %p285 = pneg %p134
        $region42: #{tpu_custom_call.1} parent=31 // pred_check_branch
          %287 = sbr.rel (%p285) target = $region44
        $region43: #{tpu_custom_call.1} parent=31 // pred_region
          %288 = dma.done %s281, 256
        $region44: #{tpu_custom_call.1} parent=31 // pred_fallthru
          _
        %s289 = sand.u32 %s61, 1
        %s290 = scalar_lea.sflag [#allocation7], %s289
        %s291 = sand.u32 %s61, 1
        %s292 = smul.addr %s291, 32
        %s293 = scalar_lea.vmem [#allocation6], %s292
        %p294 = pneg %p74
        %p295 = pneg %p71
        %s296 = sand.u32 %s23, 1
        %s297 = scalar_lea.sflag [#allocation10], %s296
        %s298 = sand.u32 %s91, 1
        %s299 = smul.addr %s298, 32
        %s300 = scalar_lea.vmem [#allocation9], %s299
        %p301 = pneg %p104
        %p302 = pneg %p101
        %s303 = sand.u32 %s23, 1
        %s304 = scalar_lea.sflag [#allocation10], %s303
        %s305 = sand.u32 %s121, 1
        %s306 = smul.addr %s305, 16
        %s307 = scalar_lea.vmem [#allocation11], %s306
        %p308 = pneg %p134
        %p309 = pneg %p131
        %p310 = pneg %p164
        %p311 = pneg %p161
        %s312 = sand.u32 %s151, 1
        %s313 = scalar_lea.sflag [#allocation8], %s312
        %s314 = sand.u32 %s151, 1
        %s315 = smul.addr %s314, 32
        %s316 = scalar_lea.vmem [#allocation12], %s315
        %s317 = smul.u32 4, %s30
        %s318 = smul.u32 4, %s30
        %s319 = smul.u32 4, %s30
        %s320 = smul.u32 4, %s30
        %p322 = scmp.eq.s32.totalorder %s32, 0
        // Predicated region
        $region45: #{tpu_custom_call.1} parent=31 // pred_check
          %p323 = pneg %p322
        $region46: #{tpu_custom_call.1} parent=31 // pred_check_branch
          %325 = sbr.rel (%p323) target = $region48
        $region47: #{tpu_custom_call.1} parent=31 // pred_region
          %v326 = vld [vmem:[%s266] sm:$0xff]
          %v327 = vld [vmem:[%s266 + $0x8] sm:$0xff]
          %v328 = vld [vmem:[%s266 + $0x10] sm:$0xff]
          %v329 = vld [vmem:[%s266 + $0x18] sm:$0xff]
          %v330 = vmul.f32 %v326, 0.25
          %v331 = vmul.f32 %v327, 0.25
          %v332 = vmul.f32 %v328, 0.25
          %v333 = vmul.f32 %v329, 0.25
          %vm334 = vcmask 130048
          %335 = vst.msk [vmem:[#allocation2] sm:$0xff] %vm334, %v330
          %336 = vst.msk [vmem:[#allocation2 + $0x8] sm:$0xff] %vm334, %v331
          %337 = vst.msk [vmem:[#allocation2 + $0x10] sm:$0xff] %vm334, %v332
          %338 = vst.msk [vmem:[#allocation2 + $0x18] sm:$0xff] %vm334, %v333
          %vm339 = vcmask 7168
          %340 = vst.msk [vmem:[#allocation3] sm:$0xff] %vm339, -inf
          %341 = vst.msk [vmem:[#allocation3 + $0x8] sm:$0xff] %vm339, -inf
          %342 = vst.msk [vmem:[#allocation3 + $0x10] sm:$0xff] %vm339, -inf
          %343 = vst.msk [vmem:[#allocation3 + $0x18] sm:$0xff] %vm339, -inf
          %344 = vst.msk [vmem:[#allocation4] sm:$0xff] %vm339, 0.0
          %345 = vst.msk [vmem:[#allocation4 + $0x8] sm:$0xff] %vm339, 0.0
          %346 = vst.msk [vmem:[#allocation4 + $0x10] sm:$0xff] %vm339, 0.0
          %347 = vst.msk [vmem:[#allocation4 + $0x18] sm:$0xff] %vm339, 0.0
          %348 = vst.msk [vmem:[#allocation5] sm:$0xff] %vm334, 0.0
          %349 = vst.msk [vmem:[#allocation5 + $0x8] sm:$0xff] %vm334, 0.0
          %350 = vst.msk [vmem:[#allocation5 + $0x10] sm:$0xff] %vm334, 0.0
          %351 = vst.msk [vmem:[#allocation5 + $0x18] sm:$0xff] %vm334, 0.0
        $region48: #{tpu_custom_call.1} parent=31 // pred_fallthru
          _
        %v352 = vld [vmem:[#allocation2] sm:$0xff]
        %v353 = vld [vmem:[#allocation2 + $0x8] sm:$0xff]
        %v354 = vld [vmem:[#allocation2 + $0x10] sm:$0xff]
        %v355 = vld [vmem:[#allocation2 + $0x18] sm:$0xff]
        %v356 = vld [vmem:[%s275] sm:$0xff]
        %v357 = vld [vmem:[%s275 + $0x8] sm:$0xff]
        %v358 = vld [vmem:[%s275 + $0x10] sm:$0xff]
        %v359 = vld [vmem:[%s275 + $0x18] sm:$0xff]
        %vm360 = vcmask 130048
        %v362 = vsel %vm360, %v352, 0
        %v365 = vsel %vm360, %v356, 0
        %367 = vmatprep.subr.mxu0 0.0
        %368 = vmatpush1.xpose.msra.mxu0 %v365
        %369 = vmatprep.subr.mxu0 0.0
        %370 = vmatpush1.xpose.msra.mxu0 0.0
        %371 = vmatprep.subr.mxu0 0.0
        %372 = vmatpush1.xpose.msra.mxu0 0.0
        %373 = vmatprep.subr.mxu0 0.0
        %374 = vmatpush1.xpose.msra.mxu0 0.0
        %375 = vmatprep.subr.mxu0 0.0
        %376 = vmatpush1.xpose.msra.mxu0 0.0
        %377 = vmatprep.subr.mxu0 0.0
        %378 = vmatpush1.xpose.msra.mxu0 0.0
        %379 = vmatprep.subr.mxu0 0.0
        %380 = vmatpush1.xpose.msra.mxu0 0.0
        %381 = vmatprep.subr.mxu0 0.0
        %382 = vmatpush1.xpose.msra.mxu0 0.0
        %383 = vmatprep.subr.mxu0 0.0
        %384 = vmatpush1.xpose.msra.mxu0 0.0
        %385 = vmatprep.subr.mxu0 0.0
        %386 = vmatpush1.xpose.msra.mxu0 0.0
        %387 = vmatprep.subr.mxu0 0.0
        %388 = vmatpush1.xpose.msra.mxu0 0.0
        %389 = vmatprep.subr.mxu0 0.0
        %390 = vmatpush1.xpose.msra.mxu0 0.0
        %391 = vmatprep.subr.mxu0 0.0
        %392 = vmatpush1.xpose.msra.mxu0 0.0
        %393 = vmatprep.subr.mxu0 0.0
        %394 = vmatpush1.xpose.msra.mxu0 0.0
        %395 = vmatprep.subr.mxu0 0.0
        %396 = vmatpush1.xpose.msra.mxu0 0.0
        %397 = vmatprep.subr.mxu0 0.0
        %398 = vmatpush1.xpose.msra.mxu0 0.0
        %399 = vmatprep.subr.mxu0 0.0
        %400 = vmatpush1.xpose.msra.mxu0 0.0
        %401 = vmatprep.subr.mxu0 0.0
        %402 = vmatpush1.xpose.msra.mxu0 0.0
        %403 = vmatprep.subr.mxu0 0.0
        %404 = vmatpush1.xpose.msra.mxu0 0.0
        %405 = vmatprep.subr.mxu0 0.0
        %406 = vmatpush1.xpose.msra.mxu0 0.0
        %407 = vmatprep.subr.mxu0 0.0
        %408 = vmatpush1.xpose.msra.mxu0 0.0
        %409 = vmatprep.subr.mxu0 0.0
        %410 = vmatpush1.xpose.msra.mxu0 0.0
        %411 = vmatprep.subr.mxu0 0.0
        %412 = vmatpush1.xpose.msra.mxu0 0.0
        %413 = vmatprep.subr.mxu0 0.0
        %414 = vmatpush1.xpose.msra.mxu0 0.0
        %415 = vmatprep.subr.mxu0 0.0
        %416 = vmatpush1.xpose.msra.mxu0 0.0
        %417 = vmatprep.subr.mxu0 0.0
        %418 = vmatpush1.xpose.msra.mxu0 0.0
        %419 = vmatprep.subr.mxu0 0.0
        %420 = vmatpush1.xpose.msra.mxu0 0.0
        %421 = vmatprep.subr.mxu0 0.0
        %422 = vmatpush1.xpose.msra.mxu0 0.0
        %423 = vmatprep.subr.mxu0 0.0
        %424 = vmatpush1.xpose.msra.mxu0 0.0
        %425 = vmatprep.subr.mxu0 0.0
        %426 = vmatpush1.xpose.msra.mxu0 0.0
        %427 = vmatprep.subr.mxu0 0.0
        %428 = vmatpush1.xpose.msra.mxu0 0.0
        %429 = vmatprep.subr.mxu0 0.0
        %430 = vmatpush1.xpose.msra.mxu0 0.0
        %431 = vmatprep.mubr.f32.mxu0 0.0
        %432 = vmatmul.mubr.f32.gmra.mrb[0].mxu0 %v362
        %v433 = vpop.f32.mrb[0].mxu0
        %v434 = vadd.f32 0.0, %v433
        %v435 = vpop.f32.mrb[0].mxu0
        %436 = vdwg.mxu0
        %v438 = vsel %vm360, %v353, 0
        %v441 = vsel %vm360, %v357, 0
        %443 = vmatprep.subr.mxu0 0.0
        %444 = vmatpush1.xpose.msra.mxu0 %v441
        %445 = vmatprep.subr.mxu0 0.0
        %446 = vmatpush1.xpose.msra.mxu0 0.0
        %447 = vmatprep.subr.mxu0 0.0
        %448 = vmatpush1.xpose.msra.mxu0 0.0
        %449 = vmatprep.subr.mxu0 0.0
        %450 = vmatpush1.xpose.msra.mxu0 0.0
        %451 = vmatprep.subr.mxu0 0.0
        %452 = vmatpush1.xpose.msra.mxu0 0.0
        %453 = vmatprep.subr.mxu0 0.0
        %454 = vmatpush1.xpose.msra.mxu0 0.0
        %455 = vmatprep.subr.mxu0 0.0
        %456 = vmatpush1.xpose.msra.mxu0 0.0
        %457 = vmatprep.subr.mxu0 0.0
        %458 = vmatpush1.xpose.msra.mxu0 0.0
        %459 = vmatprep.subr.mxu0 0.0
        %460 = vmatpush1.xpose.msra.mxu0 0.0
        %461 = vmatprep.subr.mxu0 0.0
        %462 = vmatpush1.xpose.msra.mxu0 0.0
        %463 = vmatprep.subr.mxu0 0.0
        %464 = vmatpush1.xpose.msra.mxu0 0.0
        %465 = vmatprep.subr.mxu0 0.0
        %466 = vmatpush1.xpose.msra.mxu0 0.0
        %467 = vmatprep.subr.mxu0 0.0
        %468 = vmatpush1.xpose.msra.mxu0 0.0
        %469 = vmatprep.subr.mxu0 0.0
        %470 = vmatpush1.xpose.msra.mxu0 0.0
        %471 = vmatprep.subr.mxu0 0.0
        %472 = vmatpush1.xpose.msra.mxu0 0.0
        %473 = vmatprep.subr.mxu0 0.0
        %474 = vmatpush1.xpose.msra.mxu0 0.0
        %475 = vmatprep.subr.mxu0 0.0
        %476 = vmatpush1.xpose.msra.mxu0 0.0
        %477 = vmatprep.subr.mxu0 0.0
        %478 = vmatpush1.xpose.msra.mxu0 0.0
        %479 = vmatprep.subr.mxu0 0.0
        %480 = vmatpush1.xpose.msra.mxu0 0.0
        %481 = vmatprep.subr.mxu0 0.0
        %482 = vmatpush1.xpose.msra.mxu0 0.0
        %483 = vmatprep.subr.mxu0 0.0
        %484 = vmatpush1.xpose.msra.mxu0 0.0
        %485 = vmatprep.subr.mxu0 0.0
        %486 = vmatpush1.xpose.msra.mxu0 0.0
        %487 = vmatprep.subr.mxu0 0.0
        %488 = vmatpush1.xpose.msra.mxu0 0.0
        %489 = vmatprep.subr.mxu0 0.0
        %490 = vmatpush1.xpose.msra.mxu0 0.0
        %491 = vmatprep.subr.mxu0 0.0
        %492 = vmatpush1.xpose.msra.mxu0 0.0
        %493 = vmatprep.subr.mxu0 0.0
        %494 = vmatpush1.xpose.msra.mxu0 0.0
        %495 = vmatprep.subr.mxu0 0.0
        %496 = vmatpush1.xpose.msra.mxu0 0.0
        %497 = vmatprep.subr.mxu0 0.0
        %498 = vmatpush1.xpose.msra.mxu0 0.0
        %499 = vmatprep.subr.mxu0 0.0
        %500 = vmatpush1.xpose.msra.mxu0 0.0
        %501 = vmatprep.subr.mxu0 0.0
        %502 = vmatpush1.xpose.msra.mxu0 0.0
        %503 = vmatprep.subr.mxu0 0.0
        %504 = vmatpush1.xpose.msra.mxu0 0.0
        %505 = vmatprep.subr.mxu0 0.0
        %506 = vmatpush1.xpose.msra.mxu0 0.0
        %507 = vmatprep.mubr.f32.mxu0 0.0
        %508 = vmatmul.mubr.f32.gmra.mrb[0].mxu0 %v438
        %v509 = vpop.f32.mrb[0].mxu0
        %v510 = vadd.f32 0.0, %v509
        %v511 = vpop.f32.mrb[0].mxu0
        %512 = vdwg.mxu0
        %v514 = vsel %vm360, %v354, 0
        %v517 = vsel %vm360, %v358, 0
        %519 = vmatprep.subr.mxu0 0.0
        %520 = vmatpush1.xpose.msra.mxu0 %v517
        %521 = vmatprep.subr.mxu0 0.0
        %522 = vmatpush1.xpose.msra.mxu0 0.0
        %523 = vmatprep.subr.mxu0 0.0
        %524 = vmatpush1.xpose.msra.mxu0 0.0
        %525 = vmatprep.subr.mxu0 0.0
        %526 = vmatpush1.xpose.msra.mxu0 0.0
        %527 = vmatprep.subr.mxu0 0.0
        %528 = vmatpush1.xpose.msra.mxu0 0.0
        %529 = vmatprep.subr.mxu0 0.0
        %530 = vmatpush1.xpose.msra.mxu0 0.0
        %531 = vmatprep.subr.mxu0 0.0
        %532 = vmatpush1.xpose.msra.mxu0 0.0
        %533 = vmatprep.subr.mxu0 0.0
        %534 = vmatpush1.xpose.msra.mxu0 0.0
        %535 = vmatprep.subr.mxu0 0.0
        %536 = vmatpush1.xpose.msra.mxu0 0.0
        %537 = vmatprep.subr.mxu0 0.0
        %538 = vmatpush1.xpose.msra.mxu0 0.0
        %539 = vmatprep.subr.mxu0 0.0
        %540 = vmatpush1.xpose.msra.mxu0 0.0
        %541 = vmatprep.subr.mxu0 0.0
        %542 = vmatpush1.xpose.msra.mxu0 0.0
        %543 = vmatprep.subr.mxu0 0.0
        %544 = vmatpush1.xpose.msra.mxu0 0.0
        %545 = vmatprep.subr.mxu0 0.0
        %546 = vmatpush1.xpose.msra.mxu0 0.0
        %547 = vmatprep.subr.mxu0 0.0
        %548 = vmatpush1.xpose.msra.mxu0 0.0
        %549 = vmatprep.subr.mxu0 0.0
        %550 = vmatpush1.xpose.msra.mxu0 0.0
        %551 = vmatprep.subr.mxu0 0.0
        %552 = vmatpush1.xpose.msra.mxu0 0.0
        %553 = vmatprep.subr.mxu0 0.0
        %554 = vmatpush1.xpose.msra.mxu0 0.0
        %555 = vmatprep.subr.mxu0 0.0
        %556 = vmatpush1.xpose.msra.mxu0 0.0
        %557 = vmatprep.subr.mxu0 0.0
        %558 = vmatpush1.xpose.msra.mxu0 0.0
        %559 = vmatprep.subr.mxu0 0.0
        %560 = vmatpush1.xpose.msra.mxu0 0.0
        %561 = vmatprep.subr.mxu0 0.0
        %562 = vmatpush1.xpose.msra.mxu0 0.0
        %563 = vmatprep.subr.mxu0 0.0
        %564 = vmatpush1.xpose.msra.mxu0 0.0
        %565 = vmatprep.subr.mxu0 0.0
        %566 = vmatpush1.xpose.msra.mxu0 0.0
        %567 = vmatprep.subr.mxu0 0.0
        %568 = vmatpush1.xpose.msra.mxu0 0.0
        %569 = vmatprep.subr.mxu0 0.0
        %570 = vmatpush1.xpose.msra.mxu0 0.0
        %571 = vmatprep.subr.mxu0 0.0
        %572 = vmatpush1.xpose.msra.mxu0 0.0
        %573 = vmatprep.subr.mxu0 0.0
        %574 = vmatpush1.xpose.msra.mxu0 0.0
        %575 = vmatprep.subr.mxu0 0.0
        %576 = vmatpush1.xpose.msra.mxu0 0.0
        %577 = vmatprep.subr.mxu0 0.0
        %578 = vmatpush1.xpose.msra.mxu0 0.0
        %579 = vmatprep.subr.mxu0 0.0
        %580 = vmatpush1.xpose.msra.mxu0 0.0
        %581 = vmatprep.subr.mxu0 0.0
        %582 = vmatpush1.xpose.msra.mxu0 0.0
        %583 = vmatprep.mubr.f32.mxu0 0.0
        %584 = vmatmul.mubr.f32.gmra.mrb[0].mxu0 %v514
        %v585 = vpop.f32.mrb[0].mxu0
        %v586 = vadd.f32 0.0, %v585
        %v587 = vpop.f32.mrb[0].mxu0
        %588 = vdwg.mxu0
        %v590 = vsel %vm360, %v355, 0
        %v593 = vsel %vm360, %v359, 0
        %595 = vmatprep.subr.mxu0 0.0
        %596 = vmatpush1.xpose.msra.mxu0 %v593
        %597 = vmatprep.subr.mxu0 0.0
        %598 = vmatpush1.xpose.msra.mxu0 0.0
        %599 = vmatprep.subr.mxu0 0.0
        %600 = vmatpush1.xpose.msra.mxu0 0.0
        %601 = vmatprep.subr.mxu0 0.0
        %602 = vmatpush1.xpose.msra.mxu0 0.0
        %603 = vmatprep.subr.mxu0 0.0
        %604 = vmatpush1.xpose.msra.mxu0 0.0
        %605 = vmatprep.subr.mxu0 0.0
        %606 = vmatpush1.xpose.msra.mxu0 0.0
        %607 = vmatprep.subr.mxu0 0.0
        %608 = vmatpush1.xpose.msra.mxu0 0.0
        %609 = vmatprep.subr.mxu0 0.0
        %610 = vmatpush1.xpose.msra.mxu0 0.0
        %611 = vmatprep.subr.mxu0 0.0
        %612 = vmatpush1.xpose.msra.mxu0 0.0
        %613 = vmatprep.subr.mxu0 0.0
        %614 = vmatpush1.xpose.msra.mxu0 0.0
        %615 = vmatprep.subr.mxu0 0.0
        %616 = vmatpush1.xpose.msra.mxu0 0.0
        %617 = vmatprep.subr.mxu0 0.0
        %618 = vmatpush1.xpose.msra.mxu0 0.0
        %619 = vmatprep.subr.mxu0 0.0
        %620 = vmatpush1.xpose.msra.mxu0 0.0
        %621 = vmatprep.subr.mxu0 0.0
        %622 = vmatpush1.xpose.msra.mxu0 0.0
        %623 = vmatprep.subr.mxu0 0.0
        %624 = vmatpush1.xpose.msra.mxu0 0.0
        %625 = vmatprep.subr.mxu0 0.0
        %626 = vmatpush1.xpose.msra.mxu0 0.0
        %627 = vmatprep.subr.mxu0 0.0
        %628 = vmatpush1.xpose.msra.mxu0 0.0
        %629 = vmatprep.subr.mxu0 0.0
        %630 = vmatpush1.xpose.msra.mxu0 0.0
        %631 = vmatprep.subr.mxu0 0.0
        %632 = vmatpush1.xpose.msra.mxu0 0.0
        %633 = vmatprep.subr.mxu0 0.0
        %634 = vmatpush1.xpose.msra.mxu0 0.0
        %635 = vmatprep.subr.mxu0 0.0
        %636 = vmatpush1.xpose.msra.mxu0 0.0
        %637 = vmatprep.subr.mxu0 0.0
        %638 = vmatpush1.xpose.msra.mxu0 0.0
        %639 = vmatprep.subr.mxu0 0.0
        %640 = vmatpush1.xpose.msra.mxu0 0.0
        %641 = vmatprep.subr.mxu0 0.0
        %642 = vmatpush1.xpose.msra.mxu0 0.0
        %643 = vmatprep.subr.mxu0 0.0
        %644 = vmatpush1.xpose.msra.mxu0 0.0
        %645 = vmatprep.subr.mxu0 0.0
        %646 = vmatpush1.xpose.msra.mxu0 0.0
        %647 = vmatprep.subr.mxu0 0.0
        %648 = vmatpush1.xpose.msra.mxu0 0.0
        %649 = vmatprep.subr.mxu0 0.0
        %650 = vmatpush1.xpose.msra.mxu0 0.0
        %651 = vmatprep.subr.mxu0 0.0
        %652 = vmatpush1.xpose.msra.mxu0 0.0
        %653 = vmatprep.subr.mxu0 0.0
        %654 = vmatpush1.xpose.msra.mxu0 0.0
        %655 = vmatprep.subr.mxu0 0.0
        %656 = vmatpush1.xpose.msra.mxu0 0.0
        %657 = vmatprep.subr.mxu0 0.0
        %658 = vmatpush1.xpose.msra.mxu0 0.0
        %659 = vmatprep.mubr.f32.mxu0 0.0
        %660 = vmatmul.mubr.f32.gmra.mrb[0].mxu0 %v590
        %v661 = vpop.f32.mrb[0].mxu0
        %v662 = vadd.f32 0.0, %v661
        %v663 = vpop.f32.mrb[0].mxu0
        %664 = vdwg.mxu0
        %v665 = vld [vmem:[#allocation3] sm:$0xff]
        %v666 = vld [vmem:[#allocation3 + $0x8] sm:$0xff]
        %v667 = vld [vmem:[#allocation3 + $0x10] sm:$0xff]
        %v668 = vld [vmem:[#allocation3 + $0x18] sm:$0xff]
        %vm669 = vcmask 64512
        %v670 = vsel %vm669, %v434, -inf
        %671 = vmax.xlane.f32.xlu0 %v670
        %v672 = vpop.xlane.xlu0 %671
        %v673 = vsel %vm669, %v510, -inf
        %674 = vmax.xlane.f32.xlu0 %v673
        %v675 = vpop.xlane.xlu0 %674
        %v676 = vsel %vm669, %v586, -inf
        %677 = vmax.xlane.f32.xlu0 %v676
        %v678 = vpop.xlane.xlu0 %677
        %v679 = vsel %vm669, %v662, -inf
        %680 = vmax.xlane.f32.xlu0 %v679
        %v681 = vpop.xlane.xlu0 %680
        %v682 = vmax.f32 %v665, %v672
        %v683 = vmax.f32 %v666, %v675
        %v684 = vmax.f32 %v667, %v678
        %v685 = vmax.f32 %v668, %v681
        %v686 = vsub.f32 %v665, %v682
        %v687 = vsub.f32 %v666, %v683
        %v688 = vsub.f32 %v667, %v684
        %v689 = vsub.f32 %v668, %v685
        %v690 = vmul.f32 %v686, 1.442695
        %v691 = vpow.pop %v690
        %v692 = vmul.f32 %v687, 1.442695
        %v693 = vpow.pop %v692
        %v694 = vmul.f32 %v688, 1.442695
        %v695 = vpow.pop %v694
        %v696 = vmul.f32 %v689, 1.442695
        %v697 = vpow.pop %v696
        %699 = vset.pattern.permute.xlu0 0
        %700 = vperm.xlu0 %699, %v682
        %v701 = vpop.permute.xlu0 %700
        %704 = vset.pattern.permute.xlu0 0
        %705 = vperm.xlu0 %704, %v683
        %v706 = vpop.permute.xlu0 %705
        %709 = vset.pattern.permute.xlu0 0
        %710 = vperm.xlu0 %709, %v684
        %v711 = vpop.permute.xlu0 %710
        %714 = vset.pattern.permute.xlu0 0
        %715 = vperm.xlu0 %714, %v685
        %v716 = vpop.permute.xlu0 %715
        %v718 = vsub.f32 %v434, %v701
        %v719 = vsub.f32 %v510, %v706
        %v720 = vsub.f32 %v586, %v711
        %v721 = vsub.f32 %v662, %v716
        %v722 = vmul.f32 %v718, 1.442695
        %v723 = vpow.pop %v722
        %v724 = vmul.f32 %v719, 1.442695
        %v725 = vpow.pop %v724
        %v726 = vmul.f32 %v720, 1.442695
        %v727 = vpow.pop %v726
        %v728 = vmul.f32 %v721, 1.442695
        %v729 = vpow.pop %v728
        %v730 = vld [vmem:[#allocation4] sm:$0xff]
        %v731 = vld [vmem:[#allocation4 + $0x8] sm:$0xff]
        %v732 = vld [vmem:[#allocation4 + $0x10] sm:$0xff]
        %v733 = vld [vmem:[#allocation4 + $0x18] sm:$0xff]
        %v734 = vmul.f32 %v691, %v730
        %v735 = vmul.f32 %v693, %v731
        %v736 = vmul.f32 %v695, %v732
        %v737 = vmul.f32 %v697, %v733
        %v738 = vsel %vm669, %v723, 0.0
        %739 = vadd.xlane.f32.xlu0 %v738
        %v740 = vpop.xlane.xlu0 %739
        %v741 = vsel %vm669, %v725, 0.0
        %742 = vadd.xlane.f32.xlu0 %v741
        %v743 = vpop.xlane.xlu0 %742
        %v744 = vsel %vm669, %v727, 0.0
        %745 = vadd.xlane.f32.xlu0 %v744
        %v746 = vpop.xlane.xlu0 %745
        %v747 = vsel %vm669, %v729, 0.0
        %748 = vadd.xlane.f32.xlu0 %v747
        %v749 = vpop.xlane.xlu0 %748
        %v750 = vadd.f32 %v734, %v740
        %v751 = vadd.f32 %v735, %v743
        %v752 = vadd.f32 %v736, %v746
        %v753 = vadd.f32 %v737, %v749
        %vm754 = vcmask 7168
        %755 = vst.msk [vmem:[#allocation4] sm:$0xff] %vm754, %v750
        %756 = vst.msk [vmem:[#allocation4 + $0x8] sm:$0xff] %vm754, %v751
        %757 = vst.msk [vmem:[#allocation4 + $0x10] sm:$0xff] %vm754, %v752
        %758 = vst.msk [vmem:[#allocation4 + $0x18] sm:$0xff] %vm754, %v753
        %v759 = vpack.c.bf16 %v723, %v723
        %v760 = vpack.c.bf16 %v725, %v725
        %v761 = vpack.c.bf16 %v727, %v727
        %v762 = vpack.c.bf16 %v729, %v729
        %v763 = vld [vmem:[%s284] sm:$0xf]
        %v764 = vld [vmem:[%s284 + $0x4] sm:$0xf]
        %v765 = vld [vmem:[%s284 + $0x8] sm:$0xf]
        %v766 = vld [vmem:[%s284 + $0xc] sm:$0xf]
        %v768 = vsel %vm669, %v759, 0
        %vm770 = vcmask 1043456
        %v772 = vsel %vm770, %v763, 0
        %774 = vmatprep.subr.bf16.mxu0 0
        %775 = vmatpush1.bf16.msra.mxu0 %v772
        %776 = vmatprep.subr.bf16.mxu0 0
        %777 = vmatpush1.bf16.msra.mxu0 0
        %778 = vmatprep.subr.bf16.mxu0 0
        %779 = vmatpush1.bf16.msra.mxu0 0
        %780 = vmatprep.subr.bf16.mxu0 0
        %781 = vmatpush1.bf16.msra.mxu0 0
        %782 = vmatprep.subr.bf16.mxu0 0
        %783 = vmatpush1.bf16.msra.mxu0 0
        %784 = vmatprep.subr.bf16.mxu0 0
        %785 = vmatpush1.bf16.msra.mxu0 0
        %786 = vmatprep.subr.bf16.mxu0 0
        %787 = vmatpush1.bf16.msra.mxu0 0
        %788 = vmatprep.subr.bf16.mxu0 0
        %789 = vmatpush1.bf16.msra.mxu0 0
        %790 = vmatprep.subr.bf16.mxu0 0
        %791 = vmatpush1.bf16.msra.mxu0 0
        %792 = vmatprep.subr.bf16.mxu0 0
        %793 = vmatpush1.bf16.msra.mxu0 0
        %794 = vmatprep.subr.bf16.mxu0 0
        %795 = vmatpush1.bf16.msra.mxu0 0
        %796 = vmatprep.subr.bf16.mxu0 0
        %797 = vmatpush1.bf16.msra.mxu0 0
        %798 = vmatprep.subr.bf16.mxu0 0
        %799 = vmatpush1.bf16.msra.mxu0 0
        %800 = vmatprep.subr.bf16.mxu0 0
        %801 = vmatpush1.bf16.msra.mxu0 0
        %802 = vmatprep.subr.bf16.mxu0 0
        %803 = vmatpush1.bf16.msra.mxu0 0
        %804 = vmatprep.subr.bf16.mxu0 0
        %805 = vmatpush1.bf16.msra.mxu0 0
        %806 = vmatprep.mubr.bf16.mxu0 0
        %807 = vmatmul.mubr.bf16.gmra.mrb[0].mxu0 %v768
        %v808 = vpop.f32.mrb[0].mxu0
        %v809 = vadd.f32 0.0, %v808
        %v810 = vpop.f32.mrb[0].mxu0
        %v811 = vpop.f32.mrb[0].mxu0
        %v812 = vpop.f32.mrb[0].mxu0
        %813 = vdwg.mxu0
        %v815 = vsel %vm669, %v760, 0
        %v818 = vsel %vm770, %v764, 0
        %820 = vmatprep.subr.bf16.mxu0 0
        %821 = vmatpush1.bf16.msra.mxu0 %v818
        %822 = vmatprep.subr.bf16.mxu0 0
        %823 = vmatpush1.bf16.msra.mxu0 0
        %824 = vmatprep.subr.bf16.mxu0 0
        %825 = vmatpush1.bf16.msra.mxu0 0
        %826 = vmatprep.subr.bf16.mxu0 0
        %827 = vmatpush1.bf16.msra.mxu0 0
        %828 = vmatprep.subr.bf16.mxu0 0
        %829 = vmatpush1.bf16.msra.mxu0 0
        %830 = vmatprep.subr.bf16.mxu0 0
        %831 = vmatpush1.bf16.msra.mxu0 0
        %832 = vmatprep.subr.bf16.mxu0 0
        %833 = vmatpush1.bf16.msra.mxu0 0
        %834 = vmatprep.subr.bf16.mxu0 0
        %835 = vmatpush1.bf16.msra.mxu0 0
        %836 = vmatprep.subr.bf16.mxu0 0
        %837 = vmatpush1.bf16.msra.mxu0 0
        %838 = vmatprep.subr.bf16.mxu0 0
        %839 = vmatpush1.bf16.msra.mxu0 0
        %840 = vmatprep.subr.bf16.mxu0 0
        %841 = vmatpush1.bf16.msra.mxu0 0
        %842 = vmatprep.subr.bf16.mxu0 0
        %843 = vmatpush1.bf16.msra.mxu0 0
        %844 = vmatprep.subr.bf16.mxu0 0
        %845 = vmatpush1.bf16.msra.mxu0 0
        %846 = vmatprep.subr.bf16.mxu0 0
        %847 = vmatpush1.bf16.msra.mxu0 0
        %848 = vmatprep.subr.bf16.mxu0 0
        %849 = vmatpush1.bf16.msra.mxu0 0
        %850 = vmatprep.subr.bf16.mxu0 0
        %851 = vmatpush1.bf16.msra.mxu0 0
        %852 = vmatprep.mubr.bf16.mxu0 0
        %853 = vmatmul.mubr.bf16.gmra.mrb[0].mxu0 %v815
        %v854 = vpop.f32.mrb[0].mxu0
        %v855 = vadd.f32 0.0, %v854
        %v856 = vpop.f32.mrb[0].mxu0
        %v857 = vpop.f32.mrb[0].mxu0
        %v858 = vpop.f32.mrb[0].mxu0
        %859 = vdwg.mxu0
        %v861 = vsel %vm669, %v761, 0
        %v864 = vsel %vm770, %v765, 0
        %866 = vmatprep.subr.bf16.mxu0 0
        %867 = vmatpush1.bf16.msra.mxu0 %v864
        %868 = vmatprep.subr.bf16.mxu0 0
        %869 = vmatpush1.bf16.msra.mxu0 0
        %870 = vmatprep.subr.bf16.mxu0 0
        %871 = vmatpush1.bf16.msra.mxu0 0
        %872 = vmatprep.subr.bf16.mxu0 0
        %873 = vmatpush1.bf16.msra.mxu0 0
        %874 = vmatprep.subr.bf16.mxu0 0
        %875 = vmatpush1.bf16.msra.mxu0 0
        %876 = vmatprep.subr.bf16.mxu0 0
        %877 = vmatpush1.bf16.msra.mxu0 0
        %878 = vmatprep.subr.bf16.mxu0 0
        %879 = vmatpush1.bf16.msra.mxu0 0
        %880 = vmatprep.subr.bf16.mxu0 0
        %881 = vmatpush1.bf16.msra.mxu0 0
        %882 = vmatprep.subr.bf16.mxu0 0
        %883 = vmatpush1.bf16.msra.mxu0 0
        %884 = vmatprep.subr.bf16.mxu0 0
        %885 = vmatpush1.bf16.msra.mxu0 0
        %886 = vmatprep.subr.bf16.mxu0 0
        %887 = vmatpush1.bf16.msra.mxu0 0
        %888 = vmatprep.subr.bf16.mxu0 0
        %889 = vmatpush1.bf16.msra.mxu0 0
        %890 = vmatprep.subr.bf16.mxu0 0
        %891 = vmatpush1.bf16.msra.mxu0 0
        %892 = vmatprep.subr.bf16.mxu0 0
        %893 = vmatpush1.bf16.msra.mxu0 0
        %894 = vmatprep.subr.bf16.mxu0 0
        %895 = vmatpush1.bf16.msra.mxu0 0
        %896 = vmatprep.subr.bf16.mxu0 0
        %897 = vmatpush1.bf16.msra.mxu0 0
        %898 = vmatprep.mubr.bf16.mxu0 0
        %899 = vmatmul.mubr.bf16.gmra.mrb[0].mxu0 %v861
        %v900 = vpop.f32.mrb[0].mxu0
        %v901 = vadd.f32 0.0, %v900
        %v902 = vpop.f32.mrb[0].mxu0
        %v903 = vpop.f32.mrb[0].mxu0
        %v904 = vpop.f32.mrb[0].mxu0
        %905 = vdwg.mxu0
        %v907 = vsel %vm669, %v762, 0
        %v910 = vsel %vm770, %v766, 0
        %912 = vmatprep.subr.bf16.mxu0 0
        %913 = vmatpush1.bf16.msra.mxu0 %v910
        %914 = vmatprep.subr.bf16.mxu0 0
        %915 = vmatpush1.bf16.msra.mxu0 0
        %916 = vmatprep.subr.bf16.mxu0 0
        %917 = vmatpush1.bf16.msra.mxu0 0
        %918 = vmatprep.subr.bf16.mxu0 0
        %919 = vmatpush1.bf16.msra.mxu0 0
        %920 = vmatprep.subr.bf16.mxu0 0
        %921 = vmatpush1.bf16.msra.mxu0 0
        %922 = vmatprep.subr.bf16.mxu0 0
        %923 = vmatpush1.bf16.msra.mxu0 0
        %924 = vmatprep.subr.bf16.mxu0 0
        %925 = vmatpush1.bf16.msra.mxu0 0
        %926 = vmatprep.subr.bf16.mxu0 0
        %927 = vmatpush1.bf16.msra.mxu0 0
        %928 = vmatprep.subr.bf16.mxu0 0
        %929 = vmatpush1.bf16.msra.mxu0 0
        %930 = vmatprep.subr.bf16.mxu0 0
        %931 = vmatpush1.bf16.msra.mxu0 0
        %932 = vmatprep.subr.bf16.mxu0 0
        %933 = vmatpush1.bf16.msra.mxu0 0
        %934 = vmatprep.subr.bf16.mxu0 0
        %935 = vmatpush1.bf16.msra.mxu0 0
        %936 = vmatprep.subr.bf16.mxu0 0
        %937 = vmatpush1.bf16.msra.mxu0 0
        %938 = vmatprep.subr.bf16.mxu0 0
        %939 = vmatpush1.bf16.msra.mxu0 0
        %940 = vmatprep.subr.bf16.mxu0 0
        %941 = vmatpush1.bf16.msra.mxu0 0
        %942 = vmatprep.subr.bf16.mxu0 0
        %943 = vmatpush1.bf16.msra.mxu0 0
        %944 = vmatprep.mubr.bf16.mxu0 0
        %945 = vmatmul.mubr.bf16.gmra.mrb[0].mxu0 %v907
        %v946 = vpop.f32.mrb[0].mxu0
        %v947 = vadd.f32 0.0, %v946
        %v948 = vpop.f32.mrb[0].mxu0
        %v949 = vpop.f32.mrb[0].mxu0
        %v950 = vpop.f32.mrb[0].mxu0
        %951 = vdwg.mxu0
        %v952 = vld [vmem:[#allocation5] sm:$0xff]
        %v953 = vld [vmem:[#allocation5 + $0x8] sm:$0xff]
        %v954 = vld [vmem:[#allocation5 + $0x10] sm:$0xff]
        %v955 = vld [vmem:[#allocation5 + $0x18] sm:$0xff]
        %957 = vset.pattern.permute.xlu0 0
        %958 = vperm.xlu0 %957, %v691
        %v959 = vpop.permute.xlu0 %958
        %962 = vset.pattern.permute.xlu0 0
        %963 = vperm.xlu0 %962, %v693
        %v964 = vpop.permute.xlu0 %963
        %967 = vset.pattern.permute.xlu0 0
        %968 = vperm.xlu0 %967, %v695
        %v969 = vpop.permute.xlu0 %968
        %972 = vset.pattern.permute.xlu0 0
        %973 = vperm.xlu0 %972, %v697
        %v974 = vpop.permute.xlu0 %973
        %v976 = vmul.f32 %v959, %v952
        %v977 = vmul.f32 %v964, %v953
        %v978 = vmul.f32 %v969, %v954
        %v979 = vmul.f32 %v974, %v955
        %v980 = vadd.f32 %v976, %v809
        %v981 = vadd.f32 %v977, %v855
        %v982 = vadd.f32 %v978, %v901
        %v983 = vadd.f32 %v979, %v947
        %984 = vst.msk [vmem:[#allocation5] sm:$0xff] %vm360, %v980
        %985 = vst.msk [vmem:[#allocation5 + $0x8] sm:$0xff] %vm360, %v981
        %986 = vst.msk [vmem:[#allocation5 + $0x10] sm:$0xff] %vm360, %v982
        %987 = vst.msk [vmem:[#allocation5 + $0x18] sm:$0xff] %vm360, %v983
        %988 = vst.msk [vmem:[#allocation3] sm:$0xff] %vm754, %v682
        %989 = vst.msk [vmem:[#allocation3 + $0x8] sm:$0xff] %vm754, %v683
        %990 = vst.msk [vmem:[#allocation3 + $0x10] sm:$0xff] %vm754, %v684
        %991 = vst.msk [vmem:[#allocation3 + $0x18] sm:$0xff] %vm754, %v685
        // Predicated region
        $region49: #{tpu_custom_call.1} parent=31 // pred_check
          %p992 = pneg %p322
        $region50: #{tpu_custom_call.1} parent=31 // pred_check_branch
          %994 = sbr.rel (%p992) target = $region52
        $region51: #{tpu_custom_call.1} parent=31 // pred_region
          %v995 = vld [vmem:[#allocation5] sm:$0xff]
          %v996 = vld [vmem:[#allocation5 + $0x8] sm:$0xff]
          %v997 = vld [vmem:[#allocation5 + $0x10] sm:$0xff]
          %v998 = vld [vmem:[#allocation5 + $0x18] sm:$0xff]
          %v999 = vld [vmem:[#allocation4] sm:$0xff]
          %v1000 = vld [vmem:[#allocation4 + $0x8] sm:$0xff]
          %v1001 = vld [vmem:[#allocation4 + $0x10] sm:$0xff]
          %v1002 = vld [vmem:[#allocation4 + $0x18] sm:$0xff]
          %v1003 = vrcp.pop %v999
          %v1004 = vrcp.pop %v1000
          %v1005 = vrcp.pop %v1001
          %v1006 = vrcp.pop %v1002
          %1008 = vset.pattern.permute.xlu0 0
          %1009 = vperm.xlu0 %1008, %v1003
          %v1010 = vpop.permute.xlu0 %1009
          %1013 = vset.pattern.permute.xlu0 0
          %1014 = vperm.xlu0 %1013, %v1004
          %v1015 = vpop.permute.xlu0 %1014
          %1018 = vset.pattern.permute.xlu0 0
          %1019 = vperm.xlu0 %1018, %v1005
          %v1020 = vpop.permute.xlu0 %1019
          %1023 = vset.pattern.permute.xlu0 0
          %1024 = vperm.xlu0 %1023, %v1006
          %v1025 = vpop.permute.xlu0 %1024
          %v1027 = vmul.f32 %v995, %v1010
          %v1028 = vmul.f32 %v996, %v1015
          %v1029 = vmul.f32 %v997, %v1020
          %v1030 = vmul.f32 %v998, %v1025
          %1031 = vst.msk [vmem:[%s316] sm:$0xff] %vm360, %v1027
          %1032 = vst.msk [vmem:[%s316 + $0x8] sm:$0xff] %vm360, %v1028
          %1033 = vst.msk [vmem:[%s316 + $0x10] sm:$0xff] %vm360, %v1029
          %1034 = vst.msk [vmem:[%s316 + $0x18] sm:$0xff] %vm360, %v1030
        $region52: #{tpu_custom_call.1} parent=31 // pred_fallthru
          _
        %s1035 = sand.u32 %s151, 1
        %s1036 = scalar_lea.sflag [#allocation8], %s1035
        %s1037 = sand.u32 %s151, 1
        %s1038 = smul.addr %s1037, 32
        %s1039 = scalar_lea.vmem [#allocation12], %s1038
        // Predicated region
        $region53: #{tpu_custom_call.1} parent=31 // pred_check
          %p1040 = pneg %p161
        $region54: #{tpu_custom_call.1} parent=31 // pred_check_branch
          %1042 = sbr.rel (%p1040) target = $region56
        $region55: #{tpu_custom_call.1} parent=31 // pred_region
          %s1043 = smul.u32 4, %s30
          %s1045 = ssub.s32 512, 512
          %1046 = vsyncadd %s1036, %s1045
          %s1047 = sadd.s32 %s31, %s1043
          %s1048 = smul.addr %s29, 4
          %s1049 = sadd.s32 %s1047, %s1048
          %s1050 = smul.addr %s1049, 128
          %s1051 = scalar_lea.hbm %s3, %s1050
          %s1052 = sshll.u32 %s1039, 4
          %s1053 = int_to_ptr.vmem [resolvable:$true] %s1052
          %1058 = dma.vmem_to_hbm [thread:$0]  %s1053, 512, %s1051, %s1036, 128, 128, 8
        $region56: #{tpu_custom_call.1} parent=31 // pred_fallthru
          _
      $region32: #{tpu_custom_call.1} parent=5 // pred_fallthru
        _
      %p1059 = scmp.le.s32.totalorder 2, %s18
      // Predicated region
      $region57: #{tpu_custom_call.1} parent=5 // pred_check
        %p1060 = pneg %p1059
      $region58: #{tpu_custom_call.1} parent=5 // pred_check_branch
        %1062 = sbr.rel (%p1060) target = $region60
      $region59: #{tpu_custom_call.1} parent=5 // pred_region
        %s1063 = ssub.s32 %s18, 2
        // Predicated region
        $region61: #{tpu_custom_call.1} parent=59 // pred_check
          %p1064 = pneg %p167
        $region62: #{tpu_custom_call.1} parent=59 // pred_check_branch
          %1066 = sbr.rel (%p1064) target = $region64
        $region63: #{tpu_custom_call.1} parent=59 // pred_region
          %s1067 = sand.u32 %s152, 1
          %s1068 = scalar_lea.sflag [#allocation8], %s1067
          %s1069 = sand.u32 %s152, 1
          %s1070 = smul.addr %s1069, 32
          %s1071 = scalar_lea.vmem [#allocation12], %s1070
          %1072 = dma.done %s1068, 512
        $region64: #{tpu_custom_call.1} parent=59 // pred_fallthru
          _
      $region60: #{tpu_custom_call.1} parent=5 // pred_fallthru
        _
    $region6: #{tpu_custom_call.1} parent=1 // loop_footer
      %s22 = sadd.s32 1, %s18
    $region7: #{tpu_custom_call.1} parent=1 // loop_footer_branch
      %17 = sbr.rel target = $region3
    $region8: #{tpu_custom_call.1} parent=1 // loop_exit
      _
    %1073 = vsyncpa [#allocation7], 1
    %s1074 = scalar_lea.sflag [#allocation7], 1
    %1075 = vsyncpa %s1074, 1
    %1076 = vsyncpa [#allocation10], 1
    %s1077 = scalar_lea.sflag [#allocation10], 1
    %1078 = vsyncpa %s1077, 1
    %1079 = vsyncpa [#allocation8], 1
    %s1080 = scalar_lea.sflag [#allocation8], 1
    %1081 = vsyncpa %s1080, 1

</llo_original>
